<compile_context>
chip_gen: v7x
topology: tpu7x:2x2x1
jax: 0.10.0
libtpu: 0.0.40
codegen_flags: <defaults>
</compile_context>

<pallas_src>
import jax
import jax.numpy as jnp
from jax.experimental import pallas as pl
from jax.experimental.pallas import tpu as pltpu

HIDDEN = 32    # hidden width of the MLP
LANES = 128    # TPU vreg lane width
CHUNK = 32     # rows per register-resident chunk (4 f32 vregs per tensor)


def _cdiv(a, b):
    return -(-a // b)


def _round_up(a, b):
    return _cdiv(a, b) * b


def mlp_kernel(w1_ref, b1_ref, w2_ref, b2_ref, x_ref, o_ref):
    # x_ref / o_ref: (tr, 128) lane-dense batch tile in VMEM.
    # w1/b1/w2: (32,) f32 in SMEM;  b2: (1,) f32 in SMEM.
    tr = x_ref.shape[0]

    def compute_rows(r, nrows):
        # Register-resident chunk: (nrows, 128) = nrows/8 f32 vregs.
        x = x_ref[pl.ds(r, nrows), :]
        # Two independent partial accumulators (even/odd hidden units) break
        # the serial add chain; b2 is folded into acc0's initialization, so
        # there is no zero-materialization and no trailing full-tile add.
        acc0 = jnp.maximum(x * w1_ref[0] + b1_ref[0], 0.0) * w2_ref[0] + b2_ref[0]
        acc1 = jnp.maximum(x * w1_ref[1] + b1_ref[1], 0.0) * w2_ref[1]
        for j in range(2, HIDDEN, 2):
            acc0 = acc0 + jnp.maximum(x * w1_ref[j] + b1_ref[j], 0.0) * w2_ref[j]
            acc1 = acc1 + jnp.maximum(x * w1_ref[j + 1] + b1_ref[j + 1], 0.0) * w2_ref[j + 1]
        o_ref[pl.ds(r, nrows), :] = acc0 + acc1

    n_full = tr // CHUNK
    rem = tr % CHUNK          # multiple of 8 (tr is a multiple of 8)

    if n_full > 0:
        @pl.loop(0, n_full)
        def _(c):
            compute_rows(pl.multiple_of(c * CHUNK, CHUNK), CHUNK)
    if rem > 0:
        compute_rows(n_full * CHUNK, rem)


def pretrain_model_forward(x, w1, b1, w2, b2, *, tile_rows=1024):
    """x: (N, 1) f32; w1: (1, 32); b1: (1, 32); w2: (32, 1); b2: (1, 1)."""
    n = x.shape[0]
    xf = x.reshape(-1).astype(jnp.float32)

    # Lane-dense batch layout; pad rows only up to a multiple of 8.
    rows = _cdiv(n, LANES)                 # rows of 128 batch elements
    rows8 = _round_up(max(rows, 1), 8)

    # Number of grid blocks:
    #   * enough that each block is <= tile_rows rows,
    #   * at least 2 (and even) once each block can get >= 256 rows, so the
    #     "parallel" batch axis shards across both v7x TensorCores.
    g = _cdiv(rows8, tile_rows)
    if rows8 >= 2 * 256:
        g = max(g, 2)
        if g % 2:
            g += 1
    tr = _round_up(_cdiv(rows8, g), 8)     # block rows (multiple of 8)
    total_rows = g * tr                    # waste bounded by ~8 rows / block

    pad = total_rows * LANES - n
    if pad:
        xf = jnp.pad(xf, (0, pad))
    xp = xf.reshape(total_rows, LANES)

    # Tiny parameters -> 1-D f32 vectors for SMEM.
    w1v = w1.reshape(-1).astype(jnp.float32)   # (32,)
    b1v = b1.reshape(-1).astype(jnp.float32)   # (32,)
    w2v = w2.reshape(-1).astype(jnp.float32)   # (32,)
    b2v = b2.reshape(-1).astype(jnp.float32)   # (1,)

    out = pl.pallas_call(
        mlp_kernel,
        out_shape=jax.ShapeDtypeStruct((total_rows, LANES), jnp.float32),
        grid=(g,),
        in_specs=[
            pl.BlockSpec(memory_space=pltpu.SMEM),          # w1
            pl.BlockSpec(memory_space=pltpu.SMEM),          # b1
            pl.BlockSpec(memory_space=pltpu.SMEM),          # w2
            pl.BlockSpec(memory_space=pltpu.SMEM),          # b2
            pl.BlockSpec((tr, LANES), lambda i: (i, 0)),    # x tile (pipelined)
        ],
        out_specs=pl.BlockSpec((tr, LANES), lambda i: (i, 0)),
        compiler_params=pltpu.CompilerParams(
            dimension_semantics=("parallel",),              # batch axis -> megacore
        ),
    )(w1v, b1v, w2v, b2v, xp)

    # TODO(synk): the pad + post-slice copies could be removed with an
    # in-kernel masked tail (scalar-prefetch n); secondary since VALU-bound.
    return out.reshape(-1)[:n].reshape(n, 1)


def init_params(key):
    """Deterministic init mimicking torch.nn.Linear defaults
    (uniform in [-1/sqrt(fan_in), 1/sqrt(fan_in)])."""
    k1, k2, k3, k4 = jax.random.split(key, 4)
    bound1 = 1.0 / jnp.sqrt(1.0)    # fan_in = 1
    bound2 = 1.0 / jnp.sqrt(32.0)   # fan_in = 32
    w1 = jax.random.uniform(k1, (1, 32), jnp.float32, -bound1, bound1)
    b1 = jax.random.uniform(k2, (1, 32), jnp.float32, -bound1, bound1)
    w2 = jax.random.uniform(k3, (32, 1), jnp.float32, -bound2, bound2)
    b2 = jax.random.uniform(k4, (1, 1), jnp.float32, -bound2, bound2)
    return w1, b1, w2, b2


if __name__ == "__main__":
    key = jax.random.PRNGKey(0)
    k_x, k_p = jax.random.split(key)

    # Same batch as the reference script: x = rand(1000, 1) * 6 - 3.
    N = 1000
    x = jax.random.uniform(k_x, (N, 1), jnp.float32) * 6.0 - 3.0
    w1, b1, w2, b2 = init_params(k_p)

    y = pretrain_model_forward(x, w1, b1, w2, b2)
    y = jax.block_until_ready(y)

    # Reference check in plain JAX (same math as the PyTorch module).
    h_ref = jnp.maximum(x @ w1 + b1, 0.0)
    y_ref = h_ref @ w2 + b2
    assert y.shape == (N, 1)
    assert jnp.allclose(y, y_ref, atol=1e-4, rtol=1e-4), float(
        jnp.max(jnp.abs(y - y_ref))
    )

    print("KERNEL_OK")
</pallas_src>

<mosaic_0001>
module attributes {stable_mosaic.version = 11 : i64} {
  func.func @mlp_kernel(%arg0: i32, %arg1: memref<32xf32, #tpu.memory_space<smem>>, %arg2: memref<32xf32, #tpu.memory_space<smem>>, %arg3: memref<32xf32, #tpu.memory_space<smem>>, %arg4: memref<1xf32, #tpu.memory_space<smem>>, %arg5: memref<8x128xf32, #tpu.memory_space<vmem>>, %arg6: memref<8x128xf32, #tpu.memory_space<vmem>>) attributes {dimension_semantics = [#tpu.dimension_semantics<parallel>], iteration_bounds = array<i64: 1>, scalar_prefetch = 0 : i64, scratch_operands = 0 : i64, tpu.core_type = #tpu.core_type<tc>, window_params = [{transform_indices = @transform_0, window_bounds = array<i64: 32>}, {transform_indices = @transform_1, window_bounds = array<i64: 32>}, {transform_indices = @transform_2, window_bounds = array<i64: 32>}, {transform_indices = @transform_3, window_bounds = array<i64: 1>}, {transform_indices = @transform_4, window_bounds = array<i64: 8, 128>}, {transform_indices = @transform_5, window_bounds = array<i64: 8, 128>}]} {
    %c0 = arith.constant 0 : index
    %c0_0 = arith.constant 0 : index
    %0 = vector.load %arg5[%c0, %c0_0] : memref<8x128xf32, #tpu.memory_space<vmem>>, vector<8x128xf32>
    %c0_1 = arith.constant 0 : index
    %1 = memref.load %arg1[%c0_1] : memref<32xf32, #tpu.memory_space<smem>>
    %2 = vector.broadcast %1 : f32 to vector<8x128xf32>
    %3 = arith.mulf %0, %2 : vector<8x128xf32>
    %c0_2 = arith.constant 0 : index
    %4 = memref.load %arg2[%c0_2] : memref<32xf32, #tpu.memory_space<smem>>
    %5 = vector.broadcast %4 : f32 to vector<8x128xf32>
    %6 = arith.addf %3, %5 : vector<8x128xf32>
    %cst = arith.constant 0.000000e+00 : f32
    %7 = vector.broadcast %cst : f32 to vector<8x128xf32>
    %8 = arith.maximumf %6, %7 : vector<8x128xf32>
    %c0_3 = arith.constant 0 : index
    %9 = memref.load %arg3[%c0_3] : memref<32xf32, #tpu.memory_space<smem>>
    %10 = vector.broadcast %9 : f32 to vector<8x128xf32>
    %11 = arith.mulf %8, %10 : vector<8x128xf32>
    %c0_4 = arith.constant 0 : index
    %12 = memref.load %arg4[%c0_4] : memref<1xf32, #tpu.memory_space<smem>>
    %13 = vector.broadcast %12 : f32 to vector<8x128xf32>
    %14 = arith.addf %11, %13 : vector<8x128xf32>
    %c1 = arith.constant 1 : index
    %15 = memref.load %arg1[%c1] : memref<32xf32, #tpu.memory_space<smem>>
    %16 = vector.broadcast %15 : f32 to vector<8x128xf32>
    %17 = arith.mulf %0, %16 : vector<8x128xf32>
    %c1_5 = arith.constant 1 : index
    %18 = memref.load %arg2[%c1_5] : memref<32xf32, #tpu.memory_space<smem>>
    %19 = vector.broadcast %18 : f32 to vector<8x128xf32>
    %20 = arith.addf %17, %19 : vector<8x128xf32>
    %cst_6 = arith.constant 0.000000e+00 : f32
    %21 = vector.broadcast %cst_6 : f32 to vector<8x128xf32>
    %22 = arith.maximumf %20, %21 : vector<8x128xf32>
    %c1_7 = arith.constant 1 : index
    %23 = memref.load %arg3[%c1_7] : memref<32xf32, #tpu.memory_space<smem>>
    %24 = vector.broadcast %23 : f32 to vector<8x128xf32>
    %25 = arith.mulf %22, %24 : vector<8x128xf32>
    %c2 = arith.constant 2 : index
    %26 = memref.load %arg1[%c2] : memref<32xf32, #tpu.memory_space<smem>>
    %27 = vector.broadcast %26 : f32 to vector<8x128xf32>
    %28 = arith.mulf %0, %27 : vector<8x128xf32>
    %c2_8 = arith.constant 2 : index
    %29 = memref.load %arg2[%c2_8] : memref<32xf32, #tpu.memory_space<smem>>
    %30 = vector.broadcast %29 : f32 to vector<8x128xf32>
    %31 = arith.addf %28, %30 : vector<8x128xf32>
    %cst_9 = arith.constant 0.000000e+00 : f32
    %32 = vector.broadcast %cst_9 : f32 to vector<8x128xf32>
    %33 = arith.maximumf %31, %32 : vector<8x128xf32>
    %c2_10 = arith.constant 2 : index
    %34 = memref.load %arg3[%c2_10] : memref<32xf32, #tpu.memory_space<smem>>
    %35 = vector.broadcast %34 : f32 to vector<8x128xf32>
    %36 = arith.mulf %33, %35 : vector<8x128xf32>
    %37 = arith.addf %14, %36 : vector<8x128xf32>
    %c3 = arith.constant 3 : index
    %38 = memref.load %arg1[%c3] : memref<32xf32, #tpu.memory_space<smem>>
    %39 = vector.broadcast %38 : f32 to vector<8x128xf32>
    %40 = arith.mulf %0, %39 : vector<8x128xf32>
    %c3_11 = arith.constant 3 : index
    %41 = memref.load %arg2[%c3_11] : memref<32xf32, #tpu.memory_space<smem>>
    %42 = vector.broadcast %41 : f32 to vector<8x128xf32>
    %43 = arith.addf %40, %42 : vector<8x128xf32>
    %cst_12 = arith.constant 0.000000e+00 : f32
    %44 = vector.broadcast %cst_12 : f32 to vector<8x128xf32>
    %45 = arith.maximumf %43, %44 : vector<8x128xf32>
    %c3_13 = arith.constant 3 : index
    %46 = memref.load %arg3[%c3_13] : memref<32xf32, #tpu.memory_space<smem>>
    %47 = vector.broadcast %46 : f32 to vector<8x128xf32>
    %48 = arith.mulf %45, %47 : vector<8x128xf32>
    %49 = arith.addf %25, %48 : vector<8x128xf32>
    %c4 = arith.constant 4 : index
    %50 = memref.load %arg1[%c4] : memref<32xf32, #tpu.memory_space<smem>>
    %51 = vector.broadcast %50 : f32 to vector<8x128xf32>
    %52 = arith.mulf %0, %51 : vector<8x128xf32>
    %c4_14 = arith.constant 4 : index
    %53 = memref.load %arg2[%c4_14] : memref<32xf32, #tpu.memory_space<smem>>
    %54 = vector.broadcast %53 : f32 to vector<8x128xf32>
    %55 = arith.addf %52, %54 : vector<8x128xf32>
    %cst_15 = arith.constant 0.000000e+00 : f32
    %56 = vector.broadcast %cst_15 : f32 to vector<8x128xf32>
    %57 = arith.maximumf %55, %56 : vector<8x128xf32>
    %c4_16 = arith.constant 4 : index
    %58 = memref.load %arg3[%c4_16] : memref<32xf32, #tpu.memory_space<smem>>
    %59 = vector.broadcast %58 : f32 to vector<8x128xf32>
    %60 = arith.mulf %57, %59 : vector<8x128xf32>
    %61 = arith.addf %37, %60 : vector<8x128xf32>
    %c5 = arith.constant 5 : index
    %62 = memref.load %arg1[%c5] : memref<32xf32, #tpu.memory_space<smem>>
    %63 = vector.broadcast %62 : f32 to vector<8x128xf32>
    %64 = arith.mulf %0, %63 : vector<8x128xf32>
    %c5_17 = arith.constant 5 : index
    %65 = memref.load %arg2[%c5_17] : memref<32xf32, #tpu.memory_space<smem>>
    %66 = vector.broadcast %65 : f32 to vector<8x128xf32>
    %67 = arith.addf %64, %66 : vector<8x128xf32>
    %cst_18 = arith.constant 0.000000e+00 : f32
    %68 = vector.broadcast %cst_18 : f32 to vector<8x128xf32>
    %69 = arith.maximumf %67, %68 : vector<8x128xf32>
    %c5_19 = arith.constant 5 : index
    %70 = memref.load %arg3[%c5_19] : memref<32xf32, #tpu.memory_space<smem>>
    %71 = vector.broadcast %70 : f32 to vector<8x128xf32>
    %72 = arith.mulf %69, %71 : vector<8x128xf32>
    %73 = arith.addf %49, %72 : vector<8x128xf32>
    %c6 = arith.constant 6 : index
    %74 = memref.load %arg1[%c6] : memref<32xf32, #tpu.memory_space<smem>>
    %75 = vector.broadcast %74 : f32 to vector<8x128xf32>
    %76 = arith.mulf %0, %75 : vector<8x128xf32>
    %c6_20 = arith.constant 6 : index
    %77 = memref.load %arg2[%c6_20] : memref<32xf32, #tpu.memory_space<smem>>
    %78 = vector.broadcast %77 : f32 to vector<8x128xf32>
    %79 = arith.addf %76, %78 : vector<8x128xf32>
    %cst_21 = arith.constant 0.000000e+00 : f32
    %80 = vector.broadcast %cst_21 : f32 to vector<8x128xf32>
    %81 = arith.maximumf %79, %80 : vector<8x128xf32>
    %c6_22 = arith.constant 6 : index
    %82 = memref.load %arg3[%c6_22] : memref<32xf32, #tpu.memory_space<smem>>
    %83 = vector.broadcast %82 : f32 to vector<8x128xf32>
    %84 = arith.mulf %81, %83 : vector<8x128xf32>
    %85 = arith.addf %61, %84 : vector<8x128xf32>
    %c7 = arith.constant 7 : index
    %86 = memref.load %arg1[%c7] : memref<32xf32, #tpu.memory_space<smem>>
    %87 = vector.broadcast %86 : f32 to vector<8x128xf32>
    %88 = arith.mulf %0, %87 : vector<8x128xf32>
    %c7_23 = arith.constant 7 : index
    %89 = memref.load %arg2[%c7_23] : memref<32xf32, #tpu.memory_space<smem>>
    %90 = vector.broadcast %89 : f32 to vector<8x128xf32>
    %91 = arith.addf %88, %90 : vector<8x128xf32>
    %cst_24 = arith.constant 0.000000e+00 : f32
    %92 = vector.broadcast %cst_24 : f32 to vector<8x128xf32>
    %93 = arith.maximumf %91, %92 : vector<8x128xf32>
    %c7_25 = arith.constant 7 : index
    %94 = memref.load %arg3[%c7_25] : memref<32xf32, #tpu.memory_space<smem>>
    %95 = vector.broadcast %94 : f32 to vector<8x128xf32>
    %96 = arith.mulf %93, %95 : vector<8x128xf32>
    %97 = arith.addf %73, %96 : vector<8x128xf32>
    %c8 = arith.constant 8 : index
    %98 = memref.load %arg1[%c8] : memref<32xf32, #tpu.memory_space<smem>>
    %99 = vector.broadcast %98 : f32 to vector<8x128xf32>
    %100 = arith.mulf %0, %99 : vector<8x128xf32>
    %c8_26 = arith.constant 8 : index
    %101 = memref.load %arg2[%c8_26] : memref<32xf32, #tpu.memory_space<smem>>
    %102 = vector.broadcast %101 : f32 to vector<8x128xf32>
    %103 = arith.addf %100, %102 : vector<8x128xf32>
    %cst_27 = arith.constant 0.000000e+00 : f32
    %104 = vector.broadcast %cst_27 : f32 to vector<8x128xf32>
    %105 = arith.maximumf %103, %104 : vector<8x128xf32>
    %c8_28 = arith.constant 8 : index
    %106 = memref.load %arg3[%c8_28] : memref<32xf32, #tpu.memory_space<smem>>
    %107 = vector.broadcast %106 : f32 to vector<8x128xf32>
    %108 = arith.mulf %105, %107 : vector<8x128xf32>
    %109 = arith.addf %85, %108 : vector<8x128xf32>
    %c9 = arith.constant 9 : index
    %110 = memref.load %arg1[%c9] : memref<32xf32, #tpu.memory_space<smem>>
    %111 = vector.broadcast %110 : f32 to vector<8x128xf32>
    %112 = arith.mulf %0, %111 : vector<8x128xf32>
    %c9_29 = arith.constant 9 : index
    %113 = memref.load %arg2[%c9_29] : memref<32xf32, #tpu.memory_space<smem>>
    %114 = vector.broadcast %113 : f32 to vector<8x128xf32>
    %115 = arith.addf %112, %114 : vector<8x128xf32>
    %cst_30 = arith.constant 0.000000e+00 : f32
    %116 = vector.broadcast %cst_30 : f32 to vector<8x128xf32>
    %117 = arith.maximumf %115, %116 : vector<8x128xf32>
    %c9_31 = arith.constant 9 : index
    %118 = memref.load %arg3[%c9_31] : memref<32xf32, #tpu.memory_space<smem>>
    %119 = vector.broadcast %118 : f32 to vector<8x128xf32>
    %120 = arith.mulf %117, %119 : vector<8x128xf32>
    %121 = arith.addf %97, %120 : vector<8x128xf32>
    %c10 = arith.constant 10 : index
    %122 = memref.load %arg1[%c10] : memref<32xf32, #tpu.memory_space<smem>>
    %123 = vector.broadcast %122 : f32 to vector<8x128xf32>
    %124 = arith.mulf %0, %123 : vector<8x128xf32>
    %c10_32 = arith.constant 10 : index
    %125 = memref.load %arg2[%c10_32] : memref<32xf32, #tpu.memory_space<smem>>
    %126 = vector.broadcast %125 : f32 to vector<8x128xf32>
    %127 = arith.addf %124, %126 : vector<8x128xf32>
    %cst_33 = arith.constant 0.000000e+00 : f32
    %128 = vector.broadcast %cst_33 : f32 to vector<8x128xf32>
    %129 = arith.maximumf %127, %128 : vector<8x128xf32>
    %c10_34 = arith.constant 10 : index
    %130 = memref.load %arg3[%c10_34] : memref<32xf32, #tpu.memory_space<smem>>
    %131 = vector.broadcast %130 : f32 to vector<8x128xf32>
    %132 = arith.mulf %129, %131 : vector<8x128xf32>
    %133 = arith.addf %109, %132 : vector<8x128xf32>
    %c11 = arith.constant 11 : index
    %134 = memref.load %arg1[%c11] : memref<32xf32, #tpu.memory_space<smem>>
    %135 = vector.broadcast %134 : f32 to vector<8x128xf32>
    %136 = arith.mulf %0, %135 : vector<8x128xf32>
    %c11_35 = arith.constant 11 : index
    %137 = memref.load %arg2[%c11_35] : memref<32xf32, #tpu.memory_space<smem>>
    %138 = vector.broadcast %137 : f32 to vector<8x128xf32>
    %139 = arith.addf %136, %138 : vector<8x128xf32>
    %cst_36 = arith.constant 0.000000e+00 : f32
    %140 = vector.broadcast %cst_36 : f32 to vector<8x128xf32>
    %141 = arith.maximumf %139, %140 : vector<8x128xf32>
    %c11_37 = arith.constant 11 : index
    %142 = memref.load %arg3[%c11_37] : memref<32xf32, #tpu.memory_space<smem>>
    %143 = vector.broadcast %142 : f32 to vector<8x128xf32>
    %144 = arith.mulf %141, %143 : vector<8x128xf32>
    %145 = arith.addf %121, %144 : vector<8x128xf32>
    %c12 = arith.constant 12 : index
    %146 = memref.load %arg1[%c12] : memref<32xf32, #tpu.memory_space<smem>>
    %147 = vector.broadcast %146 : f32 to vector<8x128xf32>
    %148 = arith.mulf %0, %147 : vector<8x128xf32>
    %c12_38 = arith.constant 12 : index
    %149 = memref.load %arg2[%c12_38] : memref<32xf32, #tpu.memory_space<smem>>
    %150 = vector.broadcast %149 : f32 to vector<8x128xf32>
    %151 = arith.addf %148, %150 : vector<8x128xf32>
    %cst_39 = arith.constant 0.000000e+00 : f32
    %152 = vector.broadcast %cst_39 : f32 to vector<8x128xf32>
    %153 = arith.maximumf %151, %152 : vector<8x128xf32>
    %c12_40 = arith.constant 12 : index
    %154 = memref.load %arg3[%c12_40] : memref<32xf32, #tpu.memory_space<smem>>
    %155 = vector.broadcast %154 : f32 to vector<8x128xf32>
    %156 = arith.mulf %153, %155 : vector<8x128xf32>
    %157 = arith.addf %133, %156 : vector<8x128xf32>
    %c13 = arith.constant 13 : index
    %158 = memref.load %arg1[%c13] : memref<32xf32, #tpu.memory_space<smem>>
    %159 = vector.broadcast %158 : f32 to vector<8x128xf32>
    %160 = arith.mulf %0, %159 : vector<8x128xf32>
    %c13_41 = arith.constant 13 : index
    %161 = memref.load %arg2[%c13_41] : memref<32xf32, #tpu.memory_space<smem>>
    %162 = vector.broadcast %161 : f32 to vector<8x128xf32>
    %163 = arith.addf %160, %162 : vector<8x128xf32>
    %cst_42 = arith.constant 0.000000e+00 : f32
    %164 = vector.broadcast %cst_42 : f32 to vector<8x128xf32>
    %165 = arith.maximumf %163, %164 : vector<8x128xf32>
    %c13_43 = arith.constant 13 : index
    %166 = memref.load %arg3[%c13_43] : memref<32xf32, #tpu.memory_space<smem>>
    %167 = vector.broadcast %166 : f32 to vector<8x128xf32>
    %168 = arith.mulf %165, %167 : vector<8x128xf32>
    %169 = arith.addf %145, %168 : vector<8x128xf32>
    %c14 = arith.constant 14 : index
    %170 = memref.load %arg1[%c14] : memref<32xf32, #tpu.memory_space<smem>>
    %171 = vector.broadcast %170 : f32 to vector<8x128xf32>
    %172 = arith.mulf %0, %171 : vector<8x128xf32>
    %c14_44 = arith.constant 14 : index
    %173 = memref.load %arg2[%c14_44] : memref<32xf32, #tpu.memory_space<smem>>
    %174 = vector.broadcast %173 : f32 to vector<8x128xf32>
    %175 = arith.addf %172, %174 : vector<8x128xf32>
    %cst_45 = arith.constant 0.000000e+00 : f32
    %176 = vector.broadcast %cst_45 : f32 to vector<8x128xf32>
    %177 = arith.maximumf %175, %176 : vector<8x128xf32>
    %c14_46 = arith.constant 14 : index
    %178 = memref.load %arg3[%c14_46] : memref<32xf32, #tpu.memory_space<smem>>
    %179 = vector.broadcast %178 : f32 to vector<8x128xf32>
    %180 = arith.mulf %177, %179 : vector<8x128xf32>
    %181 = arith.addf %157, %180 : vector<8x128xf32>
    %c15 = arith.constant 15 : index
    %182 = memref.load %arg1[%c15] : memref<32xf32, #tpu.memory_space<smem>>
    %183 = vector.broadcast %182 : f32 to vector<8x128xf32>
    %184 = arith.mulf %0, %183 : vector<8x128xf32>
    %c15_47 = arith.constant 15 : index
    %185 = memref.load %arg2[%c15_47] : memref<32xf32, #tpu.memory_space<smem>>
    %186 = vector.broadcast %185 : f32 to vector<8x128xf32>
    %187 = arith.addf %184, %186 : vector<8x128xf32>
    %cst_48 = arith.constant 0.000000e+00 : f32
    %188 = vector.broadcast %cst_48 : f32 to vector<8x128xf32>
    %189 = arith.maximumf %187, %188 : vector<8x128xf32>
    %c15_49 = arith.constant 15 : index
    %190 = memref.load %arg3[%c15_49] : memref<32xf32, #tpu.memory_space<smem>>
    %191 = vector.broadcast %190 : f32 to vector<8x128xf32>
    %192 = arith.mulf %189, %191 : vector<8x128xf32>
    %193 = arith.addf %169, %192 : vector<8x128xf32>
    %c16 = arith.constant 16 : index
    %194 = memref.load %arg1[%c16] : memref<32xf32, #tpu.memory_space<smem>>
    %195 = vector.broadcast %194 : f32 to vector<8x128xf32>
    %196 = arith.mulf %0, %195 : vector<8x128xf32>
    %c16_50 = arith.constant 16 : index
    %197 = memref.load %arg2[%c16_50] : memref<32xf32, #tpu.memory_space<smem>>
    %198 = vector.broadcast %197 : f32 to vector<8x128xf32>
    %199 = arith.addf %196, %198 : vector<8x128xf32>
    %cst_51 = arith.constant 0.000000e+00 : f32
    %200 = vector.broadcast %cst_51 : f32 to vector<8x128xf32>
    %201 = arith.maximumf %199, %200 : vector<8x128xf32>
    %c16_52 = arith.constant 16 : index
    %202 = memref.load %arg3[%c16_52] : memref<32xf32, #tpu.memory_space<smem>>
    %203 = vector.broadcast %202 : f32 to vector<8x128xf32>
    %204 = arith.mulf %201, %203 : vector<8x128xf32>
    %205 = arith.addf %181, %204 : vector<8x128xf32>
    %c17 = arith.constant 17 : index
    %206 = memref.load %arg1[%c17] : memref<32xf32, #tpu.memory_space<smem>>
    %207 = vector.broadcast %206 : f32 to vector<8x128xf32>
    %208 = arith.mulf %0, %207 : vector<8x128xf32>
    %c17_53 = arith.constant 17 : index
    %209 = memref.load %arg2[%c17_53] : memref<32xf32, #tpu.memory_space<smem>>
    %210 = vector.broadcast %209 : f32 to vector<8x128xf32>
    %211 = arith.addf %208, %210 : vector<8x128xf32>
    %cst_54 = arith.constant 0.000000e+00 : f32
    %212 = vector.broadcast %cst_54 : f32 to vector<8x128xf32>
    %213 = arith.maximumf %211, %212 : vector<8x128xf32>
    %c17_55 = arith.constant 17 : index
    %214 = memref.load %arg3[%c17_55] : memref<32xf32, #tpu.memory_space<smem>>
    %215 = vector.broadcast %214 : f32 to vector<8x128xf32>
    %216 = arith.mulf %213, %215 : vector<8x128xf32>
    %217 = arith.addf %193, %216 : vector<8x128xf32>
    %c18 = arith.constant 18 : index
    %218 = memref.load %arg1[%c18] : memref<32xf32, #tpu.memory_space<smem>>
    %219 = vector.broadcast %218 : f32 to vector<8x128xf32>
    %220 = arith.mulf %0, %219 : vector<8x128xf32>
    %c18_56 = arith.constant 18 : index
    %221 = memref.load %arg2[%c18_56] : memref<32xf32, #tpu.memory_space<smem>>
    %222 = vector.broadcast %221 : f32 to vector<8x128xf32>
    %223 = arith.addf %220, %222 : vector<8x128xf32>
    %cst_57 = arith.constant 0.000000e+00 : f32
    %224 = vector.broadcast %cst_57 : f32 to vector<8x128xf32>
    %225 = arith.maximumf %223, %224 : vector<8x128xf32>
    %c18_58 = arith.constant 18 : index
    %226 = memref.load %arg3[%c18_58] : memref<32xf32, #tpu.memory_space<smem>>
    %227 = vector.broadcast %226 : f32 to vector<8x128xf32>
    %228 = arith.mulf %225, %227 : vector<8x128xf32>
    %229 = arith.addf %205, %228 : vector<8x128xf32>
    %c19 = arith.constant 19 : index
    %230 = memref.load %arg1[%c19] : memref<32xf32, #tpu.memory_space<smem>>
    %231 = vector.broadcast %230 : f32 to vector<8x128xf32>
    %232 = arith.mulf %0, %231 : vector<8x128xf32>
    %c19_59 = arith.constant 19 : index
    %233 = memref.load %arg2[%c19_59] : memref<32xf32, #tpu.memory_space<smem>>
    %234 = vector.broadcast %233 : f32 to vector<8x128xf32>
    %235 = arith.addf %232, %234 : vector<8x128xf32>
    %cst_60 = arith.constant 0.000000e+00 : f32
    %236 = vector.broadcast %cst_60 : f32 to vector<8x128xf32>
    %237 = arith.maximumf %235, %236 : vector<8x128xf32>
    %c19_61 = arith.constant 19 : index
    %238 = memref.load %arg3[%c19_61] : memref<32xf32, #tpu.memory_space<smem>>
    %239 = vector.broadcast %238 : f32 to vector<8x128xf32>
    %240 = arith.mulf %237, %239 : vector<8x128xf32>
    %241 = arith.addf %217, %240 : vector<8x128xf32>
    %c20 = arith.constant 20 : index
    %242 = memref.load %arg1[%c20] : memref<32xf32, #tpu.memory_space<smem>>
    %243 = vector.broadcast %242 : f32 to vector<8x128xf32>
    %244 = arith.mulf %0, %243 : vector<8x128xf32>
    %c20_62 = arith.constant 20 : index
    %245 = memref.load %arg2[%c20_62] : memref<32xf32, #tpu.memory_space<smem>>
    %246 = vector.broadcast %245 : f32 to vector<8x128xf32>
    %247 = arith.addf %244, %246 : vector<8x128xf32>
    %cst_63 = arith.constant 0.000000e+00 : f32
    %248 = vector.broadcast %cst_63 : f32 to vector<8x128xf32>
    %249 = arith.maximumf %247, %248 : vector<8x128xf32>
    %c20_64 = arith.constant 20 : index
    %250 = memref.load %arg3[%c20_64] : memref<32xf32, #tpu.memory_space<smem>>
    %251 = vector.broadcast %250 : f32 to vector<8x128xf32>
    %252 = arith.mulf %249, %251 : vector<8x128xf32>
    %253 = arith.addf %229, %252 : vector<8x128xf32>
    %c21 = arith.constant 21 : index
    %254 = memref.load %arg1[%c21] : memref<32xf32, #tpu.memory_space<smem>>
    %255 = vector.broadcast %254 : f32 to vector<8x128xf32>
    %256 = arith.mulf %0, %255 : vector<8x128xf32>
    %c21_65 = arith.constant 21 : index
    %257 = memref.load %arg2[%c21_65] : memref<32xf32, #tpu.memory_space<smem>>
    %258 = vector.broadcast %257 : f32 to vector<8x128xf32>
    %259 = arith.addf %256, %258 : vector<8x128xf32>
    %cst_66 = arith.constant 0.000000e+00 : f32
    %260 = vector.broadcast %cst_66 : f32 to vector<8x128xf32>
    %261 = arith.maximumf %259, %260 : vector<8x128xf32>
    %c21_67 = arith.constant 21 : index
    %262 = memref.load %arg3[%c21_67] : memref<32xf32, #tpu.memory_space<smem>>
    %263 = vector.broadcast %262 : f32 to vector<8x128xf32>
    %264 = arith.mulf %261, %263 : vector<8x128xf32>
    %265 = arith.addf %241, %264 : vector<8x128xf32>
    %c22 = arith.constant 22 : index
    %266 = memref.load %arg1[%c22] : memref<32xf32, #tpu.memory_space<smem>>
    %267 = vector.broadcast %266 : f32 to vector<8x128xf32>
    %268 = arith.mulf %0, %267 : vector<8x128xf32>
    %c22_68 = arith.constant 22 : index
    %269 = memref.load %arg2[%c22_68] : memref<32xf32, #tpu.memory_space<smem>>
    %270 = vector.broadcast %269 : f32 to vector<8x128xf32>
    %271 = arith.addf %268, %270 : vector<8x128xf32>
    %cst_69 = arith.constant 0.000000e+00 : f32
    %272 = vector.broadcast %cst_69 : f32 to vector<8x128xf32>
    %273 = arith.maximumf %271, %272 : vector<8x128xf32>
    %c22_70 = arith.constant 22 : index
    %274 = memref.load %arg3[%c22_70] : memref<32xf32, #tpu.memory_space<smem>>
    %275 = vector.broadcast %274 : f32 to vector<8x128xf32>
    %276 = arith.mulf %273, %275 : vector<8x128xf32>
    %277 = arith.addf %253, %276 : vector<8x128xf32>
    %c23 = arith.constant 23 : index
    %278 = memref.load %arg1[%c23] : memref<32xf32, #tpu.memory_space<smem>>
    %279 = vector.broadcast %278 : f32 to vector<8x128xf32>
    %280 = arith.mulf %0, %279 : vector<8x128xf32>
    %c23_71 = arith.constant 23 : index
    %281 = memref.load %arg2[%c23_71] : memref<32xf32, #tpu.memory_space<smem>>
    %282 = vector.broadcast %281 : f32 to vector<8x128xf32>
    %283 = arith.addf %280, %282 : vector<8x128xf32>
    %cst_72 = arith.constant 0.000000e+00 : f32
    %284 = vector.broadcast %cst_72 : f32 to vector<8x128xf32>
    %285 = arith.maximumf %283, %284 : vector<8x128xf32>
    %c23_73 = arith.constant 23 : index
    %286 = memref.load %arg3[%c23_73] : memref<32xf32, #tpu.memory_space<smem>>
    %287 = vector.broadcast %286 : f32 to vector<8x128xf32>
    %288 = arith.mulf %285, %287 : vector<8x128xf32>
    %289 = arith.addf %265, %288 : vector<8x128xf32>
    %c24 = arith.constant 24 : index
    %290 = memref.load %arg1[%c24] : memref<32xf32, #tpu.memory_space<smem>>
    %291 = vector.broadcast %290 : f32 to vector<8x128xf32>
    %292 = arith.mulf %0, %291 : vector<8x128xf32>
    %c24_74 = arith.constant 24 : index
    %293 = memref.load %arg2[%c24_74] : memref<32xf32, #tpu.memory_space<smem>>
    %294 = vector.broadcast %293 : f32 to vector<8x128xf32>
    %295 = arith.addf %292, %294 : vector<8x128xf32>
    %cst_75 = arith.constant 0.000000e+00 : f32
    %296 = vector.broadcast %cst_75 : f32 to vector<8x128xf32>
    %297 = arith.maximumf %295, %296 : vector<8x128xf32>
    %c24_76 = arith.constant 24 : index
    %298 = memref.load %arg3[%c24_76] : memref<32xf32, #tpu.memory_space<smem>>
    %299 = vector.broadcast %298 : f32 to vector<8x128xf32>
    %300 = arith.mulf %297, %299 : vector<8x128xf32>
    %301 = arith.addf %277, %300 : vector<8x128xf32>
    %c25 = arith.constant 25 : index
    %302 = memref.load %arg1[%c25] : memref<32xf32, #tpu.memory_space<smem>>
    %303 = vector.broadcast %302 : f32 to vector<8x128xf32>
    %304 = arith.mulf %0, %303 : vector<8x128xf32>
    %c25_77 = arith.constant 25 : index
    %305 = memref.load %arg2[%c25_77] : memref<32xf32, #tpu.memory_space<smem>>
    %306 = vector.broadcast %305 : f32 to vector<8x128xf32>
    %307 = arith.addf %304, %306 : vector<8x128xf32>
    %cst_78 = arith.constant 0.000000e+00 : f32
    %308 = vector.broadcast %cst_78 : f32 to vector<8x128xf32>
    %309 = arith.maximumf %307, %308 : vector<8x128xf32>
    %c25_79 = arith.constant 25 : index
    %310 = memref.load %arg3[%c25_79] : memref<32xf32, #tpu.memory_space<smem>>
    %311 = vector.broadcast %310 : f32 to vector<8x128xf32>
    %312 = arith.mulf %309, %311 : vector<8x128xf32>
    %313 = arith.addf %289, %312 : vector<8x128xf32>
    %c26 = arith.constant 26 : index
    %314 = memref.load %arg1[%c26] : memref<32xf32, #tpu.memory_space<smem>>
    %315 = vector.broadcast %314 : f32 to vector<8x128xf32>
    %316 = arith.mulf %0, %315 : vector<8x128xf32>
    %c26_80 = arith.constant 26 : index
    %317 = memref.load %arg2[%c26_80] : memref<32xf32, #tpu.memory_space<smem>>
    %318 = vector.broadcast %317 : f32 to vector<8x128xf32>
    %319 = arith.addf %316, %318 : vector<8x128xf32>
    %cst_81 = arith.constant 0.000000e+00 : f32
    %320 = vector.broadcast %cst_81 : f32 to vector<8x128xf32>
    %321 = arith.maximumf %319, %320 : vector<8x128xf32>
    %c26_82 = arith.constant 26 : index
    %322 = memref.load %arg3[%c26_82] : memref<32xf32, #tpu.memory_space<smem>>
    %323 = vector.broadcast %322 : f32 to vector<8x128xf32>
    %324 = arith.mulf %321, %323 : vector<8x128xf32>
    %325 = arith.addf %301, %324 : vector<8x128xf32>
    %c27 = arith.constant 27 : index
    %326 = memref.load %arg1[%c27] : memref<32xf32, #tpu.memory_space<smem>>
    %327 = vector.broadcast %326 : f32 to vector<8x128xf32>
    %328 = arith.mulf %0, %327 : vector<8x128xf32>
    %c27_83 = arith.constant 27 : index
    %329 = memref.load %arg2[%c27_83] : memref<32xf32, #tpu.memory_space<smem>>
    %330 = vector.broadcast %329 : f32 to vector<8x128xf32>
    %331 = arith.addf %328, %330 : vector<8x128xf32>
    %cst_84 = arith.constant 0.000000e+00 : f32
    %332 = vector.broadcast %cst_84 : f32 to vector<8x128xf32>
    %333 = arith.maximumf %331, %332 : vector<8x128xf32>
    %c27_85 = arith.constant 27 : index
    %334 = memref.load %arg3[%c27_85] : memref<32xf32, #tpu.memory_space<smem>>
    %335 = vector.broadcast %334 : f32 to vector<8x128xf32>
    %336 = arith.mulf %333, %335 : vector<8x128xf32>
    %337 = arith.addf %313, %336 : vector<8x128xf32>
    %c28 = arith.constant 28 : index
    %338 = memref.load %arg1[%c28] : memref<32xf32, #tpu.memory_space<smem>>
    %339 = vector.broadcast %338 : f32 to vector<8x128xf32>
    %340 = arith.mulf %0, %339 : vector<8x128xf32>
    %c28_86 = arith.constant 28 : index
    %341 = memref.load %arg2[%c28_86] : memref<32xf32, #tpu.memory_space<smem>>
    %342 = vector.broadcast %341 : f32 to vector<8x128xf32>
    %343 = arith.addf %340, %342 : vector<8x128xf32>
    %cst_87 = arith.constant 0.000000e+00 : f32
    %344 = vector.broadcast %cst_87 : f32 to vector<8x128xf32>
    %345 = arith.maximumf %343, %344 : vector<8x128xf32>
    %c28_88 = arith.constant 28 : index
    %346 = memref.load %arg3[%c28_88] : memref<32xf32, #tpu.memory_space<smem>>
    %347 = vector.broadcast %346 : f32 to vector<8x128xf32>
    %348 = arith.mulf %345, %347 : vector<8x128xf32>
    %349 = arith.addf %325, %348 : vector<8x128xf32>
    %c29 = arith.constant 29 : index
    %350 = memref.load %arg1[%c29] : memref<32xf32, #tpu.memory_space<smem>>
    %351 = vector.broadcast %350 : f32 to vector<8x128xf32>
    %352 = arith.mulf %0, %351 : vector<8x128xf32>
    %c29_89 = arith.constant 29 : index
    %353 = memref.load %arg2[%c29_89] : memref<32xf32, #tpu.memory_space<smem>>
    %354 = vector.broadcast %353 : f32 to vector<8x128xf32>
    %355 = arith.addf %352, %354 : vector<8x128xf32>
    %cst_90 = arith.constant 0.000000e+00 : f32
    %356 = vector.broadcast %cst_90 : f32 to vector<8x128xf32>
    %357 = arith.maximumf %355, %356 : vector<8x128xf32>
    %c29_91 = arith.constant 29 : index
    %358 = memref.load %arg3[%c29_91] : memref<32xf32, #tpu.memory_space<smem>>
    %359 = vector.broadcast %358 : f32 to vector<8x128xf32>
    %360 = arith.mulf %357, %359 : vector<8x128xf32>
    %361 = arith.addf %337, %360 : vector<8x128xf32>
    %c30 = arith.constant 30 : index
    %362 = memref.load %arg1[%c30] : memref<32xf32, #tpu.memory_space<smem>>
    %363 = vector.broadcast %362 : f32 to vector<8x128xf32>
    %364 = arith.mulf %0, %363 : vector<8x128xf32>
    %c30_92 = arith.constant 30 : index
    %365 = memref.load %arg2[%c30_92] : memref<32xf32, #tpu.memory_space<smem>>
    %366 = vector.broadcast %365 : f32 to vector<8x128xf32>
    %367 = arith.addf %364, %366 : vector<8x128xf32>
    %cst_93 = arith.constant 0.000000e+00 : f32
    %368 = vector.broadcast %cst_93 : f32 to vector<8x128xf32>
    %369 = arith.maximumf %367, %368 : vector<8x128xf32>
    %c30_94 = arith.constant 30 : index
    %370 = memref.load %arg3[%c30_94] : memref<32xf32, #tpu.memory_space<smem>>
    %371 = vector.broadcast %370 : f32 to vector<8x128xf32>
    %372 = arith.mulf %369, %371 : vector<8x128xf32>
    %373 = arith.addf %349, %372 : vector<8x128xf32>
    %c31 = arith.constant 31 : index
    %374 = memref.load %arg1[%c31] : memref<32xf32, #tpu.memory_space<smem>>
    %375 = vector.broadcast %374 : f32 to vector<8x128xf32>
    %376 = arith.mulf %0, %375 : vector<8x128xf32>
    %c31_95 = arith.constant 31 : index
    %377 = memref.load %arg2[%c31_95] : memref<32xf32, #tpu.memory_space<smem>>
    %378 = vector.broadcast %377 : f32 to vector<8x128xf32>
    %379 = arith.addf %376, %378 : vector<8x128xf32>
    %cst_96 = arith.constant 0.000000e+00 : f32
    %380 = vector.broadcast %cst_96 : f32 to vector<8x128xf32>
    %381 = arith.maximumf %379, %380 : vector<8x128xf32>
    %c31_97 = arith.constant 31 : index
    %382 = memref.load %arg3[%c31_97] : memref<32xf32, #tpu.memory_space<smem>>
    %383 = vector.broadcast %382 : f32 to vector<8x128xf32>
    %384 = arith.mulf %381, %383 : vector<8x128xf32>
    %385 = arith.addf %361, %384 : vector<8x128xf32>
    %386 = arith.addf %373, %385 : vector<8x128xf32>
    %c0_98 = arith.constant 0 : index
    %c0_99 = arith.constant 0 : index
    %387 = vector.load %arg6[%c0_98, %c0_99] : memref<8x128xf32, #tpu.memory_space<vmem>>, vector<8x128xf32>
    tpu.vector_store %arg6[%c0_98, %c0_99], %386 {strides = array<i32>} : memref<8x128xf32, #tpu.memory_space<vmem>>, vector<8x128xf32>,
    return
  }
  func.func @transform_0(%arg0: i32) -> i32 {
    %c0_i32 = arith.constant 0 : i32
    %c0_i32_0 = arith.constant 0 : i32
    return %c0_i32 : i32
  }
  func.func @transform_1(%arg0: i32) -> i32 {
    %c0_i32 = arith.constant 0 : i32
    %c0_i32_0 = arith.constant 0 : i32
    return %c0_i32 : i32
  }
  func.func @transform_2(%arg0: i32) -> i32 {
    %c0_i32 = arith.constant 0 : i32
    %c0_i32_0 = arith.constant 0 : i32
    return %c0_i32 : i32
  }
  func.func @transform_3(%arg0: i32) -> i32 {
    %c0_i32 = arith.constant 0 : i32
    %c0_i32_0 = arith.constant 0 : i32
    return %c0_i32 : i32
  }
  func.func @transform_4(%arg0: i32) -> (i32, i32) {
    %c0_i32 = arith.constant 0 : i32
    %c0_i32_0 = arith.constant 0 : i32
    return %arg0, %c0_i32 : i32, i32
  }
  func.func @transform_5(%arg0: i32) -> (i32, i32) {
    %c0_i32 = arith.constant 0 : i32
    %c0_i32_0 = arith.constant 0 : i32
    return %arg0, %c0_i32 : i32, i32
  }
}

</mosaic_0001>

<llo_original>
// kernel: tpu_custom_call.1
$region0: #{tpu_custom_call.1}
  #allocation0 [shape = 'u32[]', space=smem, size = 0x4, offset = 0x4, fixed_abs, tag = 'smem constant byte address 0x4 - core index']
  #allocation1 [shape = 'u32[144,128]{1,0:T(1,128)}', space=vmem, size = 0x12000, scoped, tag = 'internal scratch']
  #allocation2 [shape = 'f32[1]{0:T(128)S(6)}', space=smem, size = 0x200, scoped, tag = 'scoped memory for tpu_custom_call.1']
  %s0 = inlined_call_operand.vmem [shape: f32[32], index: 0, kind: input, shape index: {}]
  %s1 = inlined_call_operand.vmem [shape: f32[32], index: 1, kind: input, shape index: {}]
  %s2 = inlined_call_operand.vmem [shape: f32[32], index: 2, kind: input, shape index: {}]
  %s3 = inlined_call_operand.<no memory space> [shape: f32[1], index: 3, kind: input, shape index: {}]
  %s4 = inlined_call_operand.vmem [shape: f32[8,128], index: 4, kind: input, shape index: {}]
  %s5 = inlined_call_operand.hbm [shape: f32[8,128], index: 5, kind: output, shape index: {}]
  %s6 = sld [smem:[#allocation0]]
  $region42: #{tpu_custom_call.1} parent=0
    _
  %s8 = ssub.s32 1, %s6
  %s9 = scalar_select 0, %s8, %s6
  %10 = sst [smem:[#allocation2]] %s3
  $region1: #{tpu_custom_call.1} parent=0
    #allocation3 [shape = 'u8[512]{0}', space=smem, size = 0x200, scoped, tag = 'input window, operand 0, single buffered']
    #allocation4 [shape = 's32[1]{0}', space=sflag, size = 0x4, scoped, tag = 'scoped memory for tpu_custom_call.1']
    #allocation5 [shape = 's32[1]{0}', space=sflag, size = 0x4, scoped, tag = 'scoped memory for tpu_custom_call.1']
    #allocation6 [shape = 'u8[512]{0}', space=smem, size = 0x200, scoped, tag = 'input window, operand 1, single buffered']
    #allocation7 [shape = 's32[1]{0}', space=sflag, size = 0x4, scoped, tag = 'scoped memory for tpu_custom_call.1']
    #allocation8 [shape = 'u8[512]{0}', space=smem, size = 0x200, scoped, tag = 'input window, operand 2, single buffered']
    #allocation9 [shape = 'u8[4096]{0}', space=vmem, size = 0x1000, scoped, tag = 'output window, operand 0, single buffered']
    %11 = vsyncpa [#allocation5], 0
    %12 = vsyncpa [#allocation7], 0
    %13 = vsyncpa [#allocation4], 0
    // Predicated region
    $region2: #{tpu_custom_call.1} parent=1 // pred_check
      _
    $region3: #{tpu_custom_call.1} parent=1 // pred_check_branch
      %15 = sbr.rel (0) target = $region5
    $region4: #{tpu_custom_call.1} parent=1 // pred_region
      %s17 = ssub.s32 16, 16
      %18 = vsyncadd [#allocation5], %s17
      %s20 = sshll.u32 %s0, 4
      %s21 = int_to_ptr.vmem [resolvable:$true] %s20
      %23 = dma.vmem_to_smem %s21, 16, [#allocation3], [#allocation5]
    $region5: #{tpu_custom_call.1} parent=1 // pred_fallthru
      _
    // Predicated region
    $region6: #{tpu_custom_call.1} parent=1 // pred_check
      _
    $region7: #{tpu_custom_call.1} parent=1 // pred_check_branch
      %25 = sbr.rel (0) target = $region9
    $region8: #{tpu_custom_call.1} parent=1 // pred_region
      %s27 = ssub.s32 16, 16
      %28 = vsyncadd [#allocation7], %s27
      %s30 = sshll.u32 %s1, 4
      %s31 = int_to_ptr.vmem [resolvable:$true] %s30
      %33 = dma.vmem_to_smem %s31, 16, [#allocation6], [#allocation7]
    $region9: #{tpu_custom_call.1} parent=1 // pred_fallthru
      _
    // Predicated region
    $region10: #{tpu_custom_call.1} parent=1 // pred_check
      _
    $region11: #{tpu_custom_call.1} parent=1 // pred_check_branch
      %35 = sbr.rel (0) target = $region13
    $region12: #{tpu_custom_call.1} parent=1 // pred_region
      %s37 = ssub.s32 16, 16
      %38 = vsyncadd [#allocation7], %s37
      %s40 = sshll.u32 %s2, 4
      %s41 = int_to_ptr.vmem [resolvable:$true] %s40
      %43 = dma.vmem_to_smem %s41, 16, [#allocation8], [#allocation7]
    $region13: #{tpu_custom_call.1} parent=1 // pred_fallthru
      _
    // Predicated region
    $region14: #{tpu_custom_call.1} parent=1 // pred_check
      _
    $region15: #{tpu_custom_call.1} parent=1 // pred_check_branch
      %45 = sbr.rel (0) target = $region17
    $region16: #{tpu_custom_call.1} parent=1 // pred_region
      _
    $region17: #{tpu_custom_call.1} parent=1 // pred_fallthru
      _
    // Predicated region
    $region18: #{tpu_custom_call.1} parent=1 // pred_check
      _
    $region19: #{tpu_custom_call.1} parent=1 // pred_check_branch
      %47 = sbr.rel (0) target = $region21
    $region20: #{tpu_custom_call.1} parent=1 // pred_region
      _
    $region21: #{tpu_custom_call.1} parent=1 // pred_fallthru
      _
    // Predicated region
    $region22: #{tpu_custom_call.1} parent=1 // pred_check
      _
    $region23: #{tpu_custom_call.1} parent=1 // pred_check_branch
      %49 = sbr.rel (0) target = $region25
    $region24: #{tpu_custom_call.1} parent=1 // pred_region
      %50 = dma.done [#allocation5], 16
    $region25: #{tpu_custom_call.1} parent=1 // pred_fallthru
      _
    // Predicated region
    $region26: #{tpu_custom_call.1} parent=1 // pred_check
      _
    $region27: #{tpu_custom_call.1} parent=1 // pred_check_branch
      %52 = sbr.rel (0) target = $region29
    $region28: #{tpu_custom_call.1} parent=1 // pred_region
      %53 = dma.done [#allocation7], 16
    $region29: #{tpu_custom_call.1} parent=1 // pred_fallthru
      _
    // Predicated region
    $region30: #{tpu_custom_call.1} parent=1 // pred_check
      _
    $region31: #{tpu_custom_call.1} parent=1 // pred_check_branch
      %55 = sbr.rel (0) target = $region33
    $region32: #{tpu_custom_call.1} parent=1 // pred_region
      %56 = dma.done [#allocation7], 16
    $region33: #{tpu_custom_call.1} parent=1 // pred_fallthru
      _
    %57 = sfence
    %v58 = vld [vmem:[%s4] sm:$0xff]
    %s59 = sld [smem:[#allocation3]]
    %v60 = vstv %s59
    %v61 = vmul.f32 %v58, %v60
    %s62 = sld [smem:[#allocation6]]
    %v63 = vstv %s62
    %v64 = vadd.f32 %v61, %v63
    %v65 = vmax.f32 %v64, 0.0
    %s66 = sld [smem:[#allocation8]]
    %v67 = vstv %s66
    %v68 = vmul.f32 %v65, %v67
    %s69 = sld [smem:[#allocation2]]
    %v70 = vstv %s69
    %v71 = vadd.f32 %v68, %v70
    %s72 = sld [smem:[#allocation3 + $0x1]]
    %v73 = vstv %s72
    %v74 = vmul.f32 %v58, %v73
    %s75 = sld [smem:[#allocation6 + $0x1]]
    %v76 = vstv %s75
    %v77 = vadd.f32 %v74, %v76
    %v78 = vmax.f32 %v77, 0.0
    %s79 = sld [smem:[#allocation8 + $0x1]]
    %v80 = vstv %s79
    %v81 = vmul.f32 %v78, %v80
    %s82 = sld [smem:[#allocation3 + $0x2]]
    %v83 = vstv %s82
    %v84 = vmul.f32 %v58, %v83
    %s85 = sld [smem:[#allocation6 + $0x2]]
    %v86 = vstv %s85
    %v87 = vadd.f32 %v84, %v86
    %v88 = vmax.f32 %v87, 0.0
    %s89 = sld [smem:[#allocation8 + $0x2]]
    %v90 = vstv %s89
    %v91 = vmul.f32 %v88, %v90
    %v92 = vadd.f32 %v71, %v91
    %s93 = sld [smem:[#allocation3 + $0x3]]
    %v94 = vstv %s93
    %v95 = vmul.f32 %v58, %v94
    %s96 = sld [smem:[#allocation6 + $0x3]]
    %v97 = vstv %s96
    %v98 = vadd.f32 %v95, %v97
    %v99 = vmax.f32 %v98, 0.0
    %s100 = sld [smem:[#allocation8 + $0x3]]
    %v101 = vstv %s100
    %v102 = vmul.f32 %v99, %v101
    %v103 = vadd.f32 %v81, %v102
    %s104 = sld [smem:[#allocation3 + $0x4]]
    %v105 = vstv %s104
    %v106 = vmul.f32 %v58, %v105
    %s107 = sld [smem:[#allocation6 + $0x4]]
    %v108 = vstv %s107
    %v109 = vadd.f32 %v106, %v108
    %v110 = vmax.f32 %v109, 0.0
    %s111 = sld [smem:[#allocation8 + $0x4]]
    %v112 = vstv %s111
    %v113 = vmul.f32 %v110, %v112
    %v114 = vadd.f32 %v92, %v113
    %s115 = sld [smem:[#allocation3 + $0x5]]
    %v116 = vstv %s115
    %v117 = vmul.f32 %v58, %v116
    %s118 = sld [smem:[#allocation6 + $0x5]]
    %v119 = vstv %s118
    %v120 = vadd.f32 %v117, %v119
    %v121 = vmax.f32 %v120, 0.0
    %s122 = sld [smem:[#allocation8 + $0x5]]
    %v123 = vstv %s122
    %v124 = vmul.f32 %v121, %v123
    %v125 = vadd.f32 %v103, %v124
    %s126 = sld [smem:[#allocation3 + $0x6]]
    %v127 = vstv %s126
    %v128 = vmul.f32 %v58, %v127
    %s129 = sld [smem:[#allocation6 + $0x6]]
    %v130 = vstv %s129
    %v131 = vadd.f32 %v128, %v130
    %v132 = vmax.f32 %v131, 0.0
    %s133 = sld [smem:[#allocation8 + $0x6]]
    %v134 = vstv %s133
    %v135 = vmul.f32 %v132, %v134
    %v136 = vadd.f32 %v114, %v135
    %s137 = sld [smem:[#allocation3 + $0x7]]
    %v138 = vstv %s137
    %v139 = vmul.f32 %v58, %v138
    %s140 = sld [smem:[#allocation6 + $0x7]]
    %v141 = vstv %s140
    %v142 = vadd.f32 %v139, %v141
    %v143 = vmax.f32 %v142, 0.0
    %s144 = sld [smem:[#allocation8 + $0x7]]
    %v145 = vstv %s144
    %v146 = vmul.f32 %v143, %v145
    %v147 = vadd.f32 %v125, %v146
    %s148 = sld [smem:[#allocation3 + $0x8]]
    %v149 = vstv %s148
    %v150 = vmul.f32 %v58, %v149
    %s151 = sld [smem:[#allocation6 + $0x8]]
    %v152 = vstv %s151
    %v153 = vadd.f32 %v150, %v152
    %v154 = vmax.f32 %v153, 0.0
    %s155 = sld [smem:[#allocation8 + $0x8]]
    %v156 = vstv %s155
    %v157 = vmul.f32 %v154, %v156
    %v158 = vadd.f32 %v136, %v157
    %s159 = sld [smem:[#allocation3 + $0x9]]
    %v160 = vstv %s159
    %v161 = vmul.f32 %v58, %v160
    %s162 = sld [smem:[#allocation6 + $0x9]]
    %v163 = vstv %s162
    %v164 = vadd.f32 %v161, %v163
    %v165 = vmax.f32 %v164, 0.0
    %s166 = sld [smem:[#allocation8 + $0x9]]
    %v167 = vstv %s166
    %v168 = vmul.f32 %v165, %v167
    %v169 = vadd.f32 %v147, %v168
    %s170 = sld [smem:[#allocation3 + $0xa]]
    %v171 = vstv %s170
    %v172 = vmul.f32 %v58, %v171
    %s173 = sld [smem:[#allocation6 + $0xa]]
    %v174 = vstv %s173
    %v175 = vadd.f32 %v172, %v174
    %v176 = vmax.f32 %v175, 0.0
    %s177 = sld [smem:[#allocation8 + $0xa]]
    %v178 = vstv %s177
    %v179 = vmul.f32 %v176, %v178
    %v180 = vadd.f32 %v158, %v179
    %s181 = sld [smem:[#allocation3 + $0xb]]
    %v182 = vstv %s181
    %v183 = vmul.f32 %v58, %v182
    %s184 = sld [smem:[#allocation6 + $0xb]]
    %v185 = vstv %s184
    %v186 = vadd.f32 %v183, %v185
    %v187 = vmax.f32 %v186, 0.0
    %s188 = sld [smem:[#allocation8 + $0xb]]
    %v189 = vstv %s188
    %v190 = vmul.f32 %v187, %v189
    %v191 = vadd.f32 %v169, %v190
    %s192 = sld [smem:[#allocation3 + $0xc]]
    %v193 = vstv %s192
    %v194 = vmul.f32 %v58, %v193
    %s195 = sld [smem:[#allocation6 + $0xc]]
    %v196 = vstv %s195
    %v197 = vadd.f32 %v194, %v196
    %v198 = vmax.f32 %v197, 0.0
    %s199 = sld [smem:[#allocation8 + $0xc]]
    %v200 = vstv %s199
    %v201 = vmul.f32 %v198, %v200
    %v202 = vadd.f32 %v180, %v201
    %s203 = sld [smem:[#allocation3 + $0xd]]
    %v204 = vstv %s203
    %v205 = vmul.f32 %v58, %v204
    %s206 = sld [smem:[#allocation6 + $0xd]]
    %v207 = vstv %s206
    %v208 = vadd.f32 %v205, %v207
    %v209 = vmax.f32 %v208, 0.0
    %s210 = sld [smem:[#allocation8 + $0xd]]
    %v211 = vstv %s210
    %v212 = vmul.f32 %v209, %v211
    %v213 = vadd.f32 %v191, %v212
    %s214 = sld [smem:[#allocation3 + $0xe]]
    %v215 = vstv %s214
    %v216 = vmul.f32 %v58, %v215
    %s217 = sld [smem:[#allocation6 + $0xe]]
    %v218 = vstv %s217
    %v219 = vadd.f32 %v216, %v218
    %v220 = vmax.f32 %v219, 0.0
    %s221 = sld [smem:[#allocation8 + $0xe]]
    %v222 = vstv %s221
    %v223 = vmul.f32 %v220, %v222
    %v224 = vadd.f32 %v202, %v223
    %s225 = sld [smem:[#allocation3 + $0xf]]
    %v226 = vstv %s225
    %v227 = vmul.f32 %v58, %v226
    %s228 = sld [smem:[#allocation6 + $0xf]]
    %v229 = vstv %s228
    %v230 = vadd.f32 %v227, %v229
    %v231 = vmax.f32 %v230, 0.0
    %s232 = sld [smem:[#allocation8 + $0xf]]
    %v233 = vstv %s232
    %v234 = vmul.f32 %v231, %v233
    %v235 = vadd.f32 %v213, %v234
    %s236 = sld [smem:[#allocation3 + $0x10]]
    %v237 = vstv %s236
    %v238 = vmul.f32 %v58, %v237
    %s239 = sld [smem:[#allocation6 + $0x10]]
    %v240 = vstv %s239
    %v241 = vadd.f32 %v238, %v240
    %v242 = vmax.f32 %v241, 0.0
    %s243 = sld [smem:[#allocation8 + $0x10]]
    %v244 = vstv %s243
    %v245 = vmul.f32 %v242, %v244
    %v246 = vadd.f32 %v224, %v245
    %s247 = sld [smem:[#allocation3 + $0x11]]
    %v248 = vstv %s247
    %v249 = vmul.f32 %v58, %v248
    %s250 = sld [smem:[#allocation6 + $0x11]]
    %v251 = vstv %s250
    %v252 = vadd.f32 %v249, %v251
    %v253 = vmax.f32 %v252, 0.0
    %s254 = sld [smem:[#allocation8 + $0x11]]
    %v255 = vstv %s254
    %v256 = vmul.f32 %v253, %v255
    %v257 = vadd.f32 %v235, %v256
    %s258 = sld [smem:[#allocation3 + $0x12]]
    %v259 = vstv %s258
    %v260 = vmul.f32 %v58, %v259
    %s261 = sld [smem:[#allocation6 + $0x12]]
    %v262 = vstv %s261
    %v263 = vadd.f32 %v260, %v262
    %v264 = vmax.f32 %v263, 0.0
    %s265 = sld [smem:[#allocation8 + $0x12]]
    %v266 = vstv %s265
    %v267 = vmul.f32 %v264, %v266
    %v268 = vadd.f32 %v246, %v267
    %s269 = sld [smem:[#allocation3 + $0x13]]
    %v270 = vstv %s269
    %v271 = vmul.f32 %v58, %v270
    %s272 = sld [smem:[#allocation6 + $0x13]]
    %v273 = vstv %s272
    %v274 = vadd.f32 %v271, %v273
    %v275 = vmax.f32 %v274, 0.0
    %s276 = sld [smem:[#allocation8 + $0x13]]
    %v277 = vstv %s276
    %v278 = vmul.f32 %v275, %v277
    %v279 = vadd.f32 %v257, %v278
    %s280 = sld [smem:[#allocation3 + $0x14]]
    %v281 = vstv %s280
    %v282 = vmul.f32 %v58, %v281
    %s283 = sld [smem:[#allocation6 + $0x14]]
    %v284 = vstv %s283
    %v285 = vadd.f32 %v282, %v284
    %v286 = vmax.f32 %v285, 0.0
    %s287 = sld [smem:[#allocation8 + $0x14]]
    %v288 = vstv %s287
    %v289 = vmul.f32 %v286, %v288
    %v290 = vadd.f32 %v268, %v289
    %s291 = sld [smem:[#allocation3 + $0x15]]
    %v292 = vstv %s291
    %v293 = vmul.f32 %v58, %v292
    %s294 = sld [smem:[#allocation6 + $0x15]]
    %v295 = vstv %s294
    %v296 = vadd.f32 %v293, %v295
    %v297 = vmax.f32 %v296, 0.0
    %s298 = sld [smem:[#allocation8 + $0x15]]
    %v299 = vstv %s298
    %v300 = vmul.f32 %v297, %v299
    %v301 = vadd.f32 %v279, %v300
    %s302 = sld [smem:[#allocation3 + $0x16]]
    %v303 = vstv %s302
    %v304 = vmul.f32 %v58, %v303
    %s305 = sld [smem:[#allocation6 + $0x16]]
    %v306 = vstv %s305
    %v307 = vadd.f32 %v304, %v306
    %v308 = vmax.f32 %v307, 0.0
    %s309 = sld [smem:[#allocation8 + $0x16]]
    %v310 = vstv %s309
    %v311 = vmul.f32 %v308, %v310
    %v312 = vadd.f32 %v290, %v311
    %s313 = sld [smem:[#allocation3 + $0x17]]
    %v314 = vstv %s313
    %v315 = vmul.f32 %v58, %v314
    %s316 = sld [smem:[#allocation6 + $0x17]]
    %v317 = vstv %s316
    %v318 = vadd.f32 %v315, %v317
    %v319 = vmax.f32 %v318, 0.0
    %s320 = sld [smem:[#allocation8 + $0x17]]
    %v321 = vstv %s320
    %v322 = vmul.f32 %v319, %v321
    %v323 = vadd.f32 %v301, %v322
    %s324 = sld [smem:[#allocation3 + $0x18]]
    %v325 = vstv %s324
    %v326 = vmul.f32 %v58, %v325
    %s327 = sld [smem:[#allocation6 + $0x18]]
    %v328 = vstv %s327
    %v329 = vadd.f32 %v326, %v328
    %v330 = vmax.f32 %v329, 0.0
    %s331 = sld [smem:[#allocation8 + $0x18]]
    %v332 = vstv %s331
    %v333 = vmul.f32 %v330, %v332
    %v334 = vadd.f32 %v312, %v333
    %s335 = sld [smem:[#allocation3 + $0x19]]
    %v336 = vstv %s335
    %v337 = vmul.f32 %v58, %v336
    %s338 = sld [smem:[#allocation6 + $0x19]]
    %v339 = vstv %s338
    %v340 = vadd.f32 %v337, %v339
    %v341 = vmax.f32 %v340, 0.0
    %s342 = sld [smem:[#allocation8 + $0x19]]
    %v343 = vstv %s342
    %v344 = vmul.f32 %v341, %v343
    %v345 = vadd.f32 %v323, %v344
    %s346 = sld [smem:[#allocation3 + $0x1a]]
    %v347 = vstv %s346
    %v348 = vmul.f32 %v58, %v347
    %s349 = sld [smem:[#allocation6 + $0x1a]]
    %v350 = vstv %s349
    %v351 = vadd.f32 %v348, %v350
    %v352 = vmax.f32 %v351, 0.0
    %s353 = sld [smem:[#allocation8 + $0x1a]]
    %v354 = vstv %s353
    %v355 = vmul.f32 %v352, %v354
    %v356 = vadd.f32 %v334, %v355
    %s357 = sld [smem:[#allocation3 + $0x1b]]
    %v358 = vstv %s357
    %v359 = vmul.f32 %v58, %v358
    %s360 = sld [smem:[#allocation6 + $0x1b]]
    %v361 = vstv %s360
    %v362 = vadd.f32 %v359, %v361
    %v363 = vmax.f32 %v362, 0.0
    %s364 = sld [smem:[#allocation8 + $0x1b]]
    %v365 = vstv %s364
    %v366 = vmul.f32 %v363, %v365
    %v367 = vadd.f32 %v345, %v366
    %s368 = sld [smem:[#allocation3 + $0x1c]]
    %v369 = vstv %s368
    %v370 = vmul.f32 %v58, %v369
    %s371 = sld [smem:[#allocation6 + $0x1c]]
    %v372 = vstv %s371
    %v373 = vadd.f32 %v370, %v372
    %v374 = vmax.f32 %v373, 0.0
    %s375 = sld [smem:[#allocation8 + $0x1c]]
    %v376 = vstv %s375
    %v377 = vmul.f32 %v374, %v376
    %v378 = vadd.f32 %v356, %v377
    %s379 = sld [smem:[#allocation3 + $0x1d]]
    %v380 = vstv %s379
    %v381 = vmul.f32 %v58, %v380
    %s382 = sld [smem:[#allocation6 + $0x1d]]
    %v383 = vstv %s382
    %v384 = vadd.f32 %v381, %v383
    %v385 = vmax.f32 %v384, 0.0
    %s386 = sld [smem:[#allocation8 + $0x1d]]
    %v387 = vstv %s386
    %v388 = vmul.f32 %v385, %v387
    %v389 = vadd.f32 %v367, %v388
    %s390 = sld [smem:[#allocation3 + $0x1e]]
    %v391 = vstv %s390
    %v392 = vmul.f32 %v58, %v391
    %s393 = sld [smem:[#allocation6 + $0x1e]]
    %v394 = vstv %s393
    %v395 = vadd.f32 %v392, %v394
    %v396 = vmax.f32 %v395, 0.0
    %s397 = sld [smem:[#allocation8 + $0x1e]]
    %v398 = vstv %s397
    %v399 = vmul.f32 %v396, %v398
    %v400 = vadd.f32 %v378, %v399
    %s401 = sld [smem:[#allocation3 + $0x1f]]
    %v402 = vstv %s401
    %v403 = vmul.f32 %v58, %v402
    %s404 = sld [smem:[#allocation6 + $0x1f]]
    %v405 = vstv %s404
    %v406 = vadd.f32 %v403, %v405
    %v407 = vmax.f32 %v406, 0.0
    %s408 = sld [smem:[#allocation8 + $0x1f]]
    %v409 = vstv %s408
    %v410 = vmul.f32 %v407, %v409
    %v411 = vadd.f32 %v389, %v410
    %v412 = vadd.f32 %v400, %v411
    %413 = vst [vmem:[#allocation9] sm:$0xff] %v412
    // Predicated region
    $region34: #{tpu_custom_call.1} parent=1 // pred_check
      _
    $region35: #{tpu_custom_call.1} parent=1 // pred_check_branch
      %415 = sbr.rel (0) target = $region37
    $region36: #{tpu_custom_call.1} parent=1 // pred_region
      %s417 = ssub.s32 128, 128
      %418 = vsyncadd [#allocation4], %s417
      %s420 = sshll.u32 [#allocation9], 4
      %s421 = int_to_ptr.vmem [resolvable:$true] %s420
      %423 = dma.vmem_to_hbm [thread:$0]  %s421, 128, %s5, [#allocation4]
    $region37: #{tpu_custom_call.1} parent=1 // pred_fallthru
      _
    // Predicated region
    $region38: #{tpu_custom_call.1} parent=1 // pred_check
      _
    $region39: #{tpu_custom_call.1} parent=1 // pred_check_branch
      %425 = sbr.rel (0) target = $region41
    $region40: #{tpu_custom_call.1} parent=1 // pred_region
      %426 = dma.done [#allocation4], 128
    $region41: #{tpu_custom_call.1} parent=1 // pred_fallthru
      _
    %427 = vsyncpa [#allocation4], 1
    %428 = vsyncpa [#allocation5], 1
    %429 = vsyncpa [#allocation7], 1

</llo_original>
